<compile_context>
chip_gen: v7x
topology: tpu7x:2x2x1
jax: 0.10.0
libtpu: 0.0.40
codegen_flags: <defaults>
</compile_context>

<pallas_src>
import functools
import math

import jax
import jax.numpy as jnp
from jax import lax
from jax.experimental import pallas as pl
from jax.experimental.pallas import tpu as pltpu


def _round_up(x, m):
    return (x + m - 1) // m * m


def _sublane_multiple(dtype):
    return max(8, 32 // jnp.dtype(dtype).itemsize)


def _vmem_capacity_bytes():
    """Physical VMEM of the current generation (fallback: v7x-safe 64 MiB)."""
    try:
        cap = getattr(pltpu.get_tpu_info(), "vmem_capacity_bytes", None)
        if cap:
            return int(cap)
    except Exception:
        pass
    return 64 << 20


def _pick_row_tile(n_pad, score_budget_bytes):
    # Prefer 256-wide multiples (the v6e/v7x MXU is 256 wide); ~4 f32 (TI, Np)
    # temporaries (scores / exp / prob) must fit the leftover VMEM budget.
    for ti in (1024, 512, 256, 128):
        if n_pad % ti == 0 and 4 * ti * n_pad * 4 <= score_budget_bytes:
            return ti
    return 128


def _ssc_kernel(x_ref, w_ref, b_ref, o_ref, acc_ref, xr_ref, mask_ref,
                *, ti, n_valid, n_pad, f32_compute, compute_dtype):
    """Grid = (B, Np // TI).

    x_ref:    (1, Cp, Np)  input slab, resident across the row-tile axis
    w_ref:    (Crp, Cp)    1x1x1 conv weight (pre-scaled by Cr**-0.25)
    b_ref:    (Crp, 1)     conv bias (pre-scaled by Cr**-0.25)
    o_ref:    (1, Cp, Np)  output block (written once, at the last step)
    acc_ref:  (Cp, Np) f32 output accumulator (persistent scratch)
    xr_ref:   (Crp, Np)    reduced features (q == k), computed once per batch
    mask_ref: (1, Np) f32  additive -1e30 mask for padded key columns
    """
    i = pl.program_id(1)
    n_i = pl.num_programs(1)

    # ---- once per batch: pointwise conv + pad-column mask ----
    @pl.when(i == 0)
    def _setup():
        xc = x_ref[0].astype(compute_dtype)                       # (Cp, Np)
        w = w_ref[...].astype(compute_dtype)                      # (Crp, Cp)
        xr = jnp.dot(w, xc, preferred_element_type=jnp.float32)   # (Crp, Np)
        xr_ref[...] = (xr + b_ref[...]).astype(compute_dtype)
        if n_pad > n_valid:
            col = lax.broadcasted_iota(jnp.int32, (1, n_pad), 1)
            mask_ref[...] = jnp.where(col < n_valid, 0.0, -1e30).astype(jnp.float32)

    # ---- per row tile: scores -> softmax -> accumulate into (Cp, Np) ----
    start = pl.multiple_of(i * ti, 128)
    q = xr_ref[:, pl.ds(start, ti)]                                # (Crp, TI) lane slice
    # Contract the channel (sublane) dim of both operands: no transposed copy.
    s = lax.dot_general(q, xr_ref[...],
                        dimension_numbers=(((0,), (0,)), ((), ())),
                        preferred_element_type=jnp.float32)        # (TI, Np) f32

    if n_pad > n_valid:
        s = s + mask_ref[...]                                      # hoisted mask, 1 add

    m = jnp.max(s, axis=-1, keepdims=True)                         # (TI, 1)
    if f32_compute:
        e = jnp.exp(s - m)                                         # f32 EUP
        l = jnp.sum(e, axis=-1, keepdims=True)
        p = e * pl.reciprocal(l, approx=False)                     # fold 1/l into e
    else:
        e = jnp.exp((s - m).astype(compute_dtype))                 # bf16 EUP (v6e/v7x native)
        l = jnp.sum(e.astype(jnp.float32), axis=-1, keepdims=True)
        p = e * pl.reciprocal(l, approx=False).astype(compute_dtype)

    xv = x_ref[0, :, pl.ds(start, ti)].astype(compute_dtype)       # (Cp, TI) lane slice
    contrib = jnp.dot(xv, p, preferred_element_type=jnp.float32)   # (Cp, Np) f32

    @pl.when(i == 0)
    def _init():
        acc_ref[...] = contrib          # first tile writes, no zero + RMW

    @pl.when(i > 0)
    def _accumulate():
        acc_ref[...] += contrib

    # ---- once per batch: residual + store ----
    @pl.when(i == n_i - 1)
    def _finish():
        o_ref[0] = (acc_ref[...] + x_ref[0].astype(jnp.float32)).astype(o_ref.dtype)


def spatial_self_correlation(x, conv_w, conv_b, *, compute_dtype=None, row_tile=None):
    """x: (B, C, D, H, W); conv_w: (Cr, C, 1, 1, 1); conv_b: (Cr,)."""
    B, C, D, H, W = x.shape
    Cr = conv_w.shape[0]
    N = D * H * W

    if compute_dtype is None:
        # bf16 MXU path automatically for bf16 inputs; f32 inputs stay f32
        # unless the caller opts in (compute_dtype=jnp.bfloat16) for the
        # ~3-4x MXU throughput at relaxed precision.
        compute_dtype = jnp.bfloat16 if x.dtype == jnp.bfloat16 else jnp.float32
    compute_dtype = jnp.dtype(compute_dtype)
    f32_compute = compute_dtype == jnp.dtype(jnp.float32)

    sub = max(_sublane_multiple(x.dtype), _sublane_multiple(compute_dtype))
    Cp = _round_up(C, sub)
    Crp = _round_up(Cr, sub)
    Np = _round_up(N, 128)

    itm = jnp.dtype(x.dtype).itemsize
    cdt = compute_dtype.itemsize

    # Generation-aware VMEM budget (128 MiB on v5e/v6e, 64 MiB per core on v7x).
    cap = _vmem_capacity_bytes()
    usable = max(cap - (16 << 20), 24 << 20)

    fixed = (4 * Cp * Np * itm                 # x + out slabs, double-buffered
             + Cp * Np * 4                     # f32 output accumulator
             + Crp * Np * cdt                  # xr (q == k)
             + 8 * Np * 4                      # pad-column mask
             + 4 * Crp * (Cp + 128) * 4        # weight / bias blocks
             + (4 << 20))                      # compiler headroom

    if row_tile is None:
        ti = _pick_row_tile(Np, max(usable - fixed, 4 * 128 * Np * 4))
    else:
        ti = row_tile
    assert Np % ti == 0 and ti % 128 == 0, \
        "row_tile must divide padded N and be a multiple of 128"
    n_i = Np // ti

    vmem_est = fixed + 4 * ti * Np * 4

    # If the double-buffered x slab pushes us past the budget, single-buffer it:
    # the per-batch slab load is negligible versus the O(N^2) compute.
    if vmem_est > usable:
        x_spec = pl.BlockSpec((1, Cp, Np), lambda b, i: (b, 0, 0),
                              pipeline_mode=pl.Buffered(1))
        vmem_est -= Cp * Np * itm
    else:
        x_spec = pl.BlockSpec((1, Cp, Np), lambda b, i: (b, 0, 0))

    # Request what we actually need, never more than (close to) physical VMEM.
    vmem_limit = int(min(max(vmem_est, 32 << 20), max(cap - (2 << 20), 32 << 20)))

    # Fold the 1/sqrt(Cr) attention scale into the conv: with xr' = Cr**-0.25 * xr,
    # xr'^T @ xr' == (xr^T @ xr) / sqrt(Cr).
    scale = float(Cr) ** -0.25
    w2 = conv_w.reshape(Cr, C).astype(jnp.float32) * scale
    b2 = conv_b.reshape(Cr, 1).astype(jnp.float32) * scale

    x_pad = jnp.pad(x.reshape(B, C, N), ((0, 0), (0, Cp - C), (0, Np - N)))
    w_pad = jnp.pad(w2, ((0, Crp - Cr), (0, Cp - C)))
    b_pad = jnp.pad(b2, ((0, Crp - Cr), (0, 0)))

    cost = pl.CostEstimate(
        flops=int(2 * B * Np * Np * (Cp + Crp) + 2 * B * Crp * Cp * Np),
        transcendentals=int(B * Np * Np),
        bytes_accessed=int(2 * B * Cp * Np * itm          # x read + out write
                           + (Crp * Cp + Crp) * 4),       # conv weight + bias
    )

    kernel = functools.partial(
        _ssc_kernel, ti=ti, n_valid=N, n_pad=Np,
        f32_compute=f32_compute, compute_dtype=compute_dtype)

    # TODO(synk): on v7x with B == 1, shard the row-tile axis across the two
    # TensorCores (per-core partial accumulators + final combine pass) so both
    # cores are fed; with the batch axis alone one core idles.
    out = pl.pallas_call(
        kernel,
        out_shape=jax.ShapeDtypeStruct((B, Cp, Np), x.dtype),
        grid_spec=pltpu.PrefetchScalarGridSpec(
            num_scalar_prefetch=0,
            grid=(B, n_i),
            in_specs=[
                x_spec,
                pl.BlockSpec((Crp, Cp), lambda b, i: (0, 0)),
                pl.BlockSpec((Crp, 1), lambda b, i: (0, 0)),
            ],
            out_specs=pl.BlockSpec((1, Cp, Np), lambda b, i: (b, 0, 0)),
            scratch_shapes=[
                pltpu.VMEM((Cp, Np), jnp.float32),        # output accumulator
                pltpu.VMEM((Crp, Np), compute_dtype),     # xr (q == k)
                pltpu.VMEM((1, Np), jnp.float32),         # pad-column mask
            ],
        ),
        compiler_params=pltpu.CompilerParams(
            dimension_semantics=("parallel", "arbitrary"),
            vmem_limit_bytes=vmem_limit,
        ),
        cost_estimate=cost,
    )(x_pad, w_pad, b_pad)

    return out[:, :C, :N].reshape(B, C, D, H, W)


def _reference(x, conv_w, conv_b):
    """Pure-JAX reference matching the PyTorch forward exactly."""
    B, C, D, H, W = x.shape
    Cr = conv_w.shape[0]
    N = D * H * W
    xf = x.reshape(B, C, N)
    w2 = conv_w.reshape(Cr, C)
    hp = jax.lax.Precision.HIGHEST
    xr = jnp.einsum("oc,bcn->bon", w2, xf, precision=hp) + conv_b[None, :, None]
    attn = jnp.einsum("bci,bcj->bij", xr, xr, precision=hp) / math.sqrt(Cr)
    attn = jax.nn.softmax(attn, axis=2)
    out = jnp.einsum("bci,bij->bcj", xf, attn, precision=hp)
    return (out + xf).reshape(B, C, D, H, W)


if __name__ == "__main__":
    # N = 4*6*8 = 192 is NOT a multiple of 128, so lane padding + the hoisted
    # column mask are exercised; row_tile=128 forces 2 row tiles per batch so
    # the init / accumulate / finalize paths are all exercised.
    B, C, D, H, W = 2, 4, 4, 6, 8
    reduction = 2
    Cr = C // reduction

    key = jax.random.PRNGKey(0)
    kx, kw, kb = jax.random.split(key, 3)

    x = jax.random.normal(kx, (B, C, D, H, W), dtype=jnp.float32)
    bound = 1.0 / math.sqrt(C)
    conv_w = jax.random.uniform(kw, (Cr, C, 1, 1, 1), jnp.float32, -bound, bound)
    conv_b = jax.random.uniform(kb, (Cr,), jnp.float32, -bound, bound)

    y_ref = _reference(x, conv_w, conv_b)

    # f32 compute path (tight check), multi-tile accumulation exercised.
    y = jax.block_until_ready(
        spatial_self_correlation(x, conv_w, conv_b, row_tile=128))
    assert y.shape == (B, C, D, H, W)
    err = float(jnp.max(jnp.abs(y - y_ref)))
    assert jnp.allclose(y, y_ref, atol=5e-3, rtol=5e-3), f"f32 path mismatch: {err}"

    # Opt-in bf16 compute path (auto row tile), relaxed tolerance.
    y16 = jax.block_until_ready(
        spatial_self_correlation(x, conv_w, conv_b, compute_dtype=jnp.bfloat16))
    err16 = float(jnp.max(jnp.abs(y16 - y_ref)))
    assert jnp.allclose(y16, y_ref, atol=3e-2, rtol=3e-2), f"bf16 path mismatch: {err16}"

    print("KERNEL_OK")
</pallas_src>

<mosaic_0001>
module attributes {stable_mosaic.version = 11 : i64} {
  func.func @_ssc_kernel(%arg0: i32, %arg1: i32, %arg2: memref<1x8x256xf32, #tpu.memory_space<vmem>>, %arg3: memref<8x8xf32, #tpu.memory_space<vmem>>, %arg4: memref<8x1xf32, #tpu.memory_space<vmem>>, %arg5: memref<1x8x256xf32, #tpu.memory_space<vmem>>, %arg6: memref<8x256xf32, #tpu.memory_space<vmem>>, %arg7: memref<8x256xf32, #tpu.memory_space<vmem>>, %arg8: memref<1x256xf32, #tpu.memory_space<vmem>>) attributes {dimension_semantics = [#tpu.dimension_semantics<parallel>, #tpu.dimension_semantics<arbitrary>], iteration_bounds = array<i64: 2, 2>, scalar_prefetch = 0 : i64, scratch_operands = 3 : i64, tpu.core_type = #tpu.core_type<tc>, window_params = [{transform_indices = @transform_0, window_bounds = array<i64: 1, 8, 256>}, {pipeline_mode = #tpu.pipeline_mode<synchronous>, transform_indices = @transform_1, window_bounds = array<i64: 8, 8>}, {pipeline_mode = #tpu.pipeline_mode<synchronous>, transform_indices = @transform_2, window_bounds = array<i64: 8, 1>}, {transform_indices = @transform_3, window_bounds = array<i64: 1, 8, 256>}]} {
    %c0_i32 = arith.constant 0 : i32
    %0 = arith.cmpi eq, %arg1, %c0_i32 : i32
    %1 = arith.extui %0 : i1 to i32
    %c0_i32_0 = arith.constant 0 : i32
    %2 = arith.cmpi ne, %1, %c0_i32_0 : i32
    scf.if %2 {
      %c0_15 = arith.constant 0 : index
      %c0_16 = arith.constant 0 : index
      %c0_17 = arith.constant 0 : index
      %35 = vector.load %arg2[%c0_15, %c0_16, %c0_17] : memref<1x8x256xf32, #tpu.memory_space<vmem>>, vector<1x8x256xf32>
      %36 = vector.shape_cast %35 : vector<1x8x256xf32> to vector<8x256xf32>
      %c0_18 = arith.constant 0 : index
      %c0_19 = arith.constant 0 : index
      %37 = vector.load %arg3[%c0_18, %c0_19] : memref<8x8xf32, #tpu.memory_space<vmem>>, vector<8x8xf32>
      %cst_20 = arith.constant dense<0.000000e+00> : vector<8x256xf32>
      %38 = tpu.matmul %37, %36, %cst_20 {dimension_numbers = #tpu.dot_dimension_numbers<[1], [0], [0], [1], [0, 0, 1, 1], [], []>} : vector<8x8xf32>, vector<8x256xf32>, vector<8x256xf32> -> vector<8x256xf32>
      %c0_21 = arith.constant 0 : index
      %c0_22 = arith.constant 0 : index
      %39 = vector.load %arg4[%c0_21, %c0_22] : memref<8x1xf32, #tpu.memory_space<vmem>>, vector<8x1xf32>
      %40 = vector.broadcast %39 : vector<8x1xf32> to vector<8x256xf32>
      %41 = arith.addf %38, %40 : vector<8x256xf32>
      %c0_23 = arith.constant 0 : index
      %c0_24 = arith.constant 0 : index
      %42 = vector.load %arg7[%c0_23, %c0_24] : memref<8x256xf32, #tpu.memory_space<vmem>>, vector<8x256xf32>
      tpu.vector_store %arg7[%c0_23, %c0_24], %41 {strides = array<i32>} : memref<8x256xf32, #tpu.memory_space<vmem>>, vector<8x256xf32>,
      %43 = tpu.iota {dimensions = array<i32: 1>} : vector<1x256xi32>
      %c192_i32 = arith.constant 192 : i32
      %44 = vector.broadcast %c192_i32 : i32 to vector<1x256xi32>
      %45 = arith.cmpi slt, %43, %44 : vector<1x256xi32>
      %cst_25 = arith.constant 0.000000e+00 : f32
      %cst_26 = arith.constant -1.000000e+30 : f32
      %46 = vector.broadcast %cst_25 : f32 to vector<1x256xf32>
      %47 = vector.broadcast %cst_26 : f32 to vector<1x256xf32>
      %48 = arith.select %45, %46, %47 : vector<1x256xi1>, vector<1x256xf32>
      %c0_27 = arith.constant 0 : index
      %c0_28 = arith.constant 0 : index
      %49 = vector.load %arg8[%c0_27, %c0_28] : memref<1x256xf32, #tpu.memory_space<vmem>>, vector<1x256xf32>
      tpu.vector_store %arg8[%c0_27, %c0_28], %48 {strides = array<i32>} : memref<1x256xf32, #tpu.memory_space<vmem>>, vector<1x256xf32>,
    } else {
    }
    %c128_i32 = arith.constant 128 : i32
    %3 = arith.muli %arg1, %c128_i32 : i32
    %4 = tpu.assume_multiple %3, 128 : i32
    %c0 = arith.constant 0 : index
    %5 = arith.index_cast %4 : i32 to index
    %6 = vector.load %arg7[%c0, %5] : memref<8x256xf32, #tpu.memory_space<vmem>>, vector<8x128xf32>
    %c0_1 = arith.constant 0 : index
    %c0_2 = arith.constant 0 : index
    %7 = vector.load %arg7[%c0_1, %c0_2] : memref<8x256xf32, #tpu.memory_space<vmem>>, vector<8x256xf32>
    %cst = arith.constant dense<0.000000e+00> : vector<128x256xf32>
    %8 = tpu.matmul %6, %7, %cst {dimension_numbers = #tpu.dot_dimension_numbers<[0], [0], [1], [1], [0, 1, 1, 1], [], []>} : vector<8x128xf32>, vector<8x256xf32>, vector<128x256xf32> -> vector<128x256xf32>
    %c0_3 = arith.constant 0 : index
    %c0_4 = arith.constant 0 : index
    %9 = vector.load %arg8[%c0_3, %c0_4] : memref<1x256xf32, #tpu.memory_space<vmem>>, vector<1x256xf32>
    %10 = vector.broadcast %9 : vector<1x256xf32> to vector<128x256xf32>
    %11 = arith.addf %8, %10 : vector<128x256xf32>
    %cst_5 = arith.constant dense<0xFF800000> : vector<128xf32>
    %12 = vector.multi_reduction <maximumf>, %11, %cst_5 [1] : vector<128x256xf32> to vector<128xf32>
    %13 = vector.shape_cast %12 : vector<128xf32> to vector<128x1xf32>
    %14 = vector.broadcast %13 : vector<128x1xf32> to vector<128x256xf32>
    %15 = arith.subf %11, %14 : vector<128x256xf32>
    %16 = math.exp %15 : vector<128x256xf32>
    %cst_6 = arith.constant dense<0.000000e+00> : vector<128xf32>
    %17 = vector.multi_reduction <add>, %16, %cst_6 [1] : vector<128x256xf32> to vector<128xf32>
    %18 = vector.shape_cast %17 : vector<128xf32> to vector<128x1xf32>
    %19 = tpu.reciprocal %18 : vector<128x1xf32> -> vector<128x1xf32>
    %20 = vector.broadcast %19 : vector<128x1xf32> to vector<128x256xf32>
    %21 = arith.mulf %16, %20 : vector<128x256xf32>
    %c0_7 = arith.constant 0 : index
    %c0_8 = arith.constant 0 : index
    %22 = arith.index_cast %4 : i32 to index
    %23 = vector.load %arg2[%c0_7, %c0_8, %22] : memref<1x8x256xf32, #tpu.memory_space<vmem>>, vector<1x8x128xf32>
    %24 = vector.shape_cast %23 : vector<1x8x128xf32> to vector<8x128xf32>
    %cst_9 = arith.constant dense<0.000000e+00> : vector<8x256xf32>
    %25 = tpu.matmul %24, %21, %cst_9 {dimension_numbers = #tpu.dot_dimension_numbers<[1], [0], [0], [1], [0, 0, 1, 1], [], []>} : vector<8x128xf32>, vector<128x256xf32>, vector<8x256xf32> -> vector<8x256xf32>
    %c0_i32_10 = arith.constant 0 : i32
    %26 = arith.cmpi eq, %arg1, %c0_i32_10 : i32
    %27 = arith.extui %26 : i1 to i32
    %c0_i32_11 = arith.constant 0 : i32
    %28 = arith.cmpi ne, %27, %c0_i32_11 : i32
    scf.if %28 {
      %c0_15 = arith.constant 0 : index
      %c0_16 = arith.constant 0 : index
      %35 = vector.load %arg6[%c0_15, %c0_16] : memref<8x256xf32, #tpu.memory_space<vmem>>, vector<8x256xf32>
      tpu.vector_store %arg6[%c0_15, %c0_16], %25 {strides = array<i32>} : memref<8x256xf32, #tpu.memory_space<vmem>>, vector<8x256xf32>,
    } else {
    }
    %c0_i32_12 = arith.constant 0 : i32
    %29 = arith.cmpi sgt, %arg1, %c0_i32_12 : i32
    %30 = arith.extui %29 : i1 to i32
    %c0_i32_13 = arith.constant 0 : i32
    %31 = arith.cmpi ne, %30, %c0_i32_13 : i32
    scf.if %31 {
      %c0_15 = arith.constant 0 : index
      %c0_16 = arith.constant 0 : index
      %35 = vector.load %arg6[%c0_15, %c0_16] : memref<8x256xf32, #tpu.memory_space<vmem>>, vector<8x256xf32>
      %36 = arith.addf %35, %25 : vector<8x256xf32>
      %c0_17 = arith.constant 0 : index
      %c0_18 = arith.constant 0 : index
      %37 = vector.load %arg6[%c0_17, %c0_18] : memref<8x256xf32, #tpu.memory_space<vmem>>, vector<8x256xf32>
      tpu.vector_store %arg6[%c0_17, %c0_18], %36 {strides = array<i32>} : memref<8x256xf32, #tpu.memory_space<vmem>>, vector<8x256xf32>,
    } else {
    }
    %c1_i32 = arith.constant 1 : i32
    %32 = arith.cmpi eq, %arg1, %c1_i32 : i32
    %33 = arith.extui %32 : i1 to i32
    %c0_i32_14 = arith.constant 0 : i32
    %34 = arith.cmpi ne, %33, %c0_i32_14 : i32
    scf.if %34 {
      %c0_15 = arith.constant 0 : index
      %c0_16 = arith.constant 0 : index
      %35 = vector.load %arg6[%c0_15, %c0_16] : memref<8x256xf32, #tpu.memory_space<vmem>>, vector<8x256xf32>
      %c0_17 = arith.constant 0 : index
      %c0_18 = arith.constant 0 : index
      %c0_19 = arith.constant 0 : index
      %36 = vector.load %arg2[%c0_17, %c0_18, %c0_19] : memref<1x8x256xf32, #tpu.memory_space<vmem>>, vector<1x8x256xf32>
      %37 = vector.shape_cast %36 : vector<1x8x256xf32> to vector<8x256xf32>
      %38 = arith.addf %35, %37 : vector<8x256xf32>
      %c0_20 = arith.constant 0 : index
      %c0_21 = arith.constant 0 : index
      %c0_22 = arith.constant 0 : index
      %39 = vector.load %arg5[%c0_20, %c0_21, %c0_22] : memref<1x8x256xf32, #tpu.memory_space<vmem>>, vector<1x8x256xf32>
      %40 = vector.shape_cast %39 : vector<1x8x256xf32> to vector<8x256xf32>
      %41 = vector.shape_cast %38 : vector<8x256xf32> to vector<1x8x256xf32>
      tpu.vector_store %arg5[%c0_20, %c0_21, %c0_22], %41 {strides = array<i32>} : memref<1x8x256xf32, #tpu.memory_space<vmem>>, vector<1x8x256xf32>,
    } else {
    }
    return
  }
  func.func @transform_0(%arg0: i32, %arg1: i32) -> (i32, i32, i32) {
    %c0_i32 = arith.constant 0 : i32
    %c0_i32_0 = arith.constant 0 : i32
    %c0_i32_1 = arith.constant 0 : i32
    return %arg0, %c0_i32, %c0_i32_0 : i32, i32, i32
  }
  func.func @transform_1(%arg0: i32, %arg1: i32) -> (i32, i32) {
    %c0_i32 = arith.constant 0 : i32
    %c0_i32_0 = arith.constant 0 : i32
    %c0_i32_1 = arith.constant 0 : i32
    return %c0_i32, %c0_i32_0 : i32, i32
  }
  func.func @transform_2(%arg0: i32, %arg1: i32) -> (i32, i32) {
    %c0_i32 = arith.constant 0 : i32
    %c0_i32_0 = arith.constant 0 : i32
    %c0_i32_1 = arith.constant 0 : i32
    return %c0_i32, %c0_i32_0 : i32, i32
  }
  func.func @transform_3(%arg0: i32, %arg1: i32) -> (i32, i32, i32) {
    %c0_i32 = arith.constant 0 : i32
    %c0_i32_0 = arith.constant 0 : i32
    %c0_i32_1 = arith.constant 0 : i32
    return %arg0, %c0_i32, %c0_i32_0 : i32, i32, i32
  }
}

</mosaic_0001>

<llo_original>
// kernel: tpu_custom_call.1
$region0: #{tpu_custom_call.1}
  #allocation0 [shape = 'u32[]', space=smem, size = 0x4, offset = 0x4, fixed_abs, tag = 'smem constant byte address 0x4 - core index']
  #allocation1 [shape = 'u32[144,128]{1,0:T(1,128)}', space=vmem, size = 0x12000, scoped, tag = 'internal scratch']
  #allocation2 [shape = 'f32[8,256]{1,0:T(8,128)}', space=vmem, size = 0x2000, scoped, tag = 'scratch operand']
  #allocation3 [shape = 'f32[8,256]{1,0:T(8,128)}', space=vmem, size = 0x2000, scoped, tag = 'scratch operand']
  #allocation4 [shape = 'f32[1,256]{1,0:T(1,128)}', space=vmem, size = 0x400, scoped, tag = 'scratch operand']
  %s0 = inlined_call_operand.hbm [shape: f32[2,8,256], index: 0, kind: input, shape index: {}]
  %s1 = inlined_call_operand.vmem [shape: f32[8,8], index: 1, kind: input, shape index: {}]
  %s2 = inlined_call_operand.vmem [shape: f32[8,1], index: 2, kind: input, shape index: {}]
  %s3 = inlined_call_operand.hbm [shape: f32[2,8,256], index: 3, kind: output, shape index: {}]
  %s4 = sld [smem:[#allocation0]]
  $region65: #{tpu_custom_call.1} parent=0
    _
  %s6 = ssub.s32 1, %s4
  %s7 = scalar_select 0, %s6, %s4
  $region1: #{tpu_custom_call.1} parent=0
    #allocation5 [shape = 'u8[16384]{0}', space=vmem, size = 0x4000, scoped, tag = 'input window, operand 0']
    #allocation6 [shape = 's32[2]{0}', space=sflag, size = 0x8, scoped, tag = 'scoped memory for tpu_custom_call.1']
    #allocation7 [shape = 's32[2]{0}', space=sflag, size = 0x8, scoped, tag = 'scoped memory for tpu_custom_call.1']
    #allocation8 [shape = 'u8[16384]{0}', space=vmem, size = 0x4000, scoped, tag = 'output window, operand 0']
    %8 = vsyncpa [#allocation6], 0
    %s9 = scalar_lea.sflag [#allocation6], 1
    %10 = vsyncpa %s9, 0
    %11 = vsyncpa [#allocation7], 0
    %s12 = scalar_lea.sflag [#allocation7], 1
    %13 = vsyncpa %s12, 0
    loop: start=0, step=1, limit=6
    $region2: #{tpu_custom_call.1} parent=1 // loop_pre_header
      _
    $region3: #{tpu_custom_call.1} parent=1 // loop_header
      %s15 = sphi 0, %s19
      %p16 = scmp.ge.s32.totalorder %s15, 6
      %s22 = sphi 0, %s34
      %s23 = sphi 0, %s30
      %s24 = sphi 0, %s22
      %s25 = sphi 0, %s23
      %s26 = sphi 0, %s24
      %s27 = sphi 0, %s25
      %s37 = sphi 0, %s39
      %s40 = sphi 0, %s37
      %s41 = sphi 0, %s40
      %s57 = sphi 0, %s41
      %s61 = sphi 0, %s61
      %s63 = sphi 0, %s61
      %s64 = sphi 0, %s63
      %s78 = sphi 0, %s64
      %s82 = sphi 0, %s82
      %s84 = sphi 0, %s82
      %s85 = sphi 0, %s84
      %s99 = sphi 0, %s85
      %s105 = sphi 0, %s107
      %s108 = sphi 0, %s105
      %s109 = sphi 0, %s108
      %s125 = sphi 0, %s109
    $region4: #{tpu_custom_call.1} parent=1 // loop_header_branch
      %18 = sbr.rel (%p16) target = $region8
    $region5: #{tpu_custom_call.1} parent=1 // loop_body
      %s20 = ssub.s32 %s15, 1
      %s21 = ssub.s32 %s15, 2
      %s28 = sadd.s32 1, %s23
      %p29 = scmp.ge.s32.totalorder %s28, 2
      %s30 = scalar_select %p29, 0, %s28
      %s31 = sadd.s32 1, %s22
      %s32 = scalar_select %p29, %s31, %s22
      %p33 = scmp.ge.s32.totalorder %s32, 2
      %s34 = scalar_select %p33, 0, %s32
      %s35 = ssub.s32 %s22, %s34
      %p36 = scmp.eq.s32.totalorder %s35, 0
      %s38 = sadd.s32 %s37, 1
      %s39 = scalar_select %p36, %s37, %s38
      %p42 = pneg %p36
      %p43 = scmp.eq.s32.totalorder %s15, 3
      %p44 = por %p42, %p43
      %p45 = scmp.ne.s32.totalorder %s37, %s40
      %p46 = scmp.eq.s32.totalorder %s15, 0
      %p47 = por %p45, %p46
      %p48 = scmp.ne.s32.totalorder %s37, %s40
      %p49 = scmp.eq.s32.totalorder %s20, 3
      %p50 = por %p48, %p49
      %p51 = scmp.ne.s32.totalorder %s40, %s41
      %p52 = scmp.eq.s32.totalorder %s20, 0
      %p53 = por %p51, %p52
      %p54 = scmp.ne.s32.totalorder %s40, %s41
      %p55 = scmp.eq.s32.totalorder %s21, 3
      %p56 = por %p54, %p55
      %p58 = scmp.ne.s32.totalorder %s41, %s57
      %p59 = scmp.eq.s32.totalorder %s21, 0
      %p60 = por %p58, %p59
      %s62 = sadd.s32 %s61, 1
      %p65 = scmp.eq.s32.totalorder %s15, 3
      %p66 = scmp.ne.s32.totalorder %s61, %s63
      %p67 = scmp.eq.s32.totalorder %s15, 0
      %p68 = por %p66, %p67
      %p69 = scmp.ne.s32.totalorder %s61, %s63
      %p70 = scmp.eq.s32.totalorder %s20, 3
      %p71 = por %p69, %p70
      %p72 = scmp.ne.s32.totalorder %s63, %s64
      %p73 = scmp.eq.s32.totalorder %s20, 0
      %p74 = por %p72, %p73
      %p75 = scmp.ne.s32.totalorder %s63, %s64
      %p76 = scmp.eq.s32.totalorder %s21, 3
      %p77 = por %p75, %p76
      %p79 = scmp.ne.s32.totalorder %s64, %s78
      %p80 = scmp.eq.s32.totalorder %s21, 0
      %p81 = por %p79, %p80
      %s83 = sadd.s32 %s82, 1
      %p86 = scmp.eq.s32.totalorder %s15, 3
      %p87 = scmp.ne.s32.totalorder %s82, %s84
      %p88 = scmp.eq.s32.totalorder %s15, 0
      %p89 = por %p87, %p88
      %p90 = scmp.ne.s32.totalorder %s82, %s84
      %p91 = scmp.eq.s32.totalorder %s20, 3
      %p92 = por %p90, %p91
      %p93 = scmp.ne.s32.totalorder %s84, %s85
      %p94 = scmp.eq.s32.totalorder %s20, 0
      %p95 = por %p93, %p94
      %p96 = scmp.ne.s32.totalorder %s84, %s85
      %p97 = scmp.eq.s32.totalorder %s21, 3
      %p98 = por %p96, %p97
      %p100 = scmp.ne.s32.totalorder %s85, %s99
      %p101 = scmp.eq.s32.totalorder %s21, 0
      %p102 = por %p100, %p101
      %s103 = ssub.s32 %s22, %s34
      %p104 = scmp.eq.s32.totalorder %s103, 0
      %s106 = sadd.s32 %s105, 1
      %s107 = scalar_select %p104, %s105, %s106
      %p110 = pneg %p104
      %p111 = scmp.eq.s32.totalorder %s15, 3
      %p112 = por %p110, %p111
      %p113 = scmp.ne.s32.totalorder %s105, %s108
      %p114 = scmp.eq.s32.totalorder %s15, 0
      %p115 = por %p113, %p114
      %p116 = scmp.ne.s32.totalorder %s105, %s108
      %p117 = scmp.eq.s32.totalorder %s20, 3
      %p118 = por %p116, %p117
      %p119 = scmp.ne.s32.totalorder %s108, %s109
      %p120 = scmp.eq.s32.totalorder %s20, 0
      %p121 = por %p119, %p120
      %p122 = scmp.ne.s32.totalorder %s108, %s109
      %p123 = scmp.eq.s32.totalorder %s21, 3
      %p124 = por %p122, %p123
      %p126 = scmp.ne.s32.totalorder %s109, %s125
      %p127 = scmp.eq.s32.totalorder %s21, 0
      %p128 = por %p126, %p127
      %p129 = scmp.le.s32.totalorder 1, %s15
      %p130 = scmp.lt.s32.totalorder %s15, 5
      %p131 = pnand %p129, %p130
      %p132 = pneg %p131
      // Predicated region
      $region9: #{tpu_custom_call.1} parent=5 // pred_check
        _
      $region10: #{tpu_custom_call.1} parent=5 // pred_check_branch
        %134 = sbr.rel (%p131) target = $region12
      $region11: #{tpu_custom_call.1} parent=5 // pred_region
        %s135 = ssub.s32 %s15, 1
        // Predicated region
        $region13: #{tpu_custom_call.1} parent=11 // pred_check
          %p136 = pneg %p74
        $region14: #{tpu_custom_call.1} parent=11 // pred_check_branch
          %138 = sbr.rel (%p136) target = $region16
        $region15: #{tpu_custom_call.1} parent=11 // pred_region
          _
        $region16: #{tpu_custom_call.1} parent=11 // pred_fallthru
          _
        // Predicated region
        $region17: #{tpu_custom_call.1} parent=11 // pred_check
          %p139 = pneg %p95
        $region18: #{tpu_custom_call.1} parent=11 // pred_check_branch
          %141 = sbr.rel (%p139) target = $region20
        $region19: #{tpu_custom_call.1} parent=11 // pred_region
          _
        $region20: #{tpu_custom_call.1} parent=11 // pred_fallthru
          _
      $region12: #{tpu_custom_call.1} parent=5 // pred_fallthru
        _
      %p142 = scmp.lt.s32.totalorder %s15, 4
      // Predicated region
      $region21: #{tpu_custom_call.1} parent=5 // pred_check
        %p143 = pneg %p142
      $region22: #{tpu_custom_call.1} parent=5 // pred_check_branch
        %145 = sbr.rel (%p143) target = $region24
      $region23: #{tpu_custom_call.1} parent=5 // pred_region
        // Predicated region
        $region25: #{tpu_custom_call.1} parent=23 // pred_check
          %p146 = pneg %p47
        $region26: #{tpu_custom_call.1} parent=23 // pred_check_branch
          %148 = sbr.rel (%p146) target = $region28
        $region27: #{tpu_custom_call.1} parent=23 // pred_region
          %s149 = sand.u32 %s37, 1
          %s150 = scalar_lea.sflag [#allocation6], %s149
          %s151 = sand.u32 %s37, 1
          %s152 = smul.addr %s151, 16
          %s153 = scalar_lea.vmem [#allocation5], %s152
          %s155 = ssub.s32 256, 256
          %156 = vsyncadd %s150, %s155
          %s157 = smul.addr %s22, 2
          %s158 = smul.addr %s157, 128
          %s159 = scalar_lea.hbm %s0, %s158
          %s161 = sshll.u32 %s153, 4
          %s162 = int_to_ptr.vmem [resolvable:$true] %s161
          %164 = dma.hbm_to_vmem [thread:$0]  %s159, 256, %s162, %s150
        $region28: #{tpu_custom_call.1} parent=23 // pred_fallthru
          _
      $region24: #{tpu_custom_call.1} parent=5 // pred_fallthru
        _
      %p165 = scmp.le.s32.totalorder 1, %s15
      %p166 = scmp.lt.s32.totalorder %s15, 5
      %p167 = pnand %p165, %p166
      %p168 = pneg %p167
      // Predicated region
      $region29: #{tpu_custom_call.1} parent=5 // pred_check
        _
      $region30: #{tpu_custom_call.1} parent=5 // pred_check_branch
        %170 = sbr.rel (%p167) target = $region32
      $region31: #{tpu_custom_call.1} parent=5 // pred_region
        %s171 = ssub.s32 %s15, 1
        %s172 = sand.u32 %s40, 1
        %s173 = scalar_lea.sflag [#allocation6], %s172
        %s174 = sand.u32 %s40, 1
        %s175 = smul.addr %s174, 16
        %s176 = scalar_lea.vmem [#allocation5], %s175
        // Predicated region
        $region33: #{tpu_custom_call.1} parent=31 // pred_check
          %p177 = pneg %p53
        $region34: #{tpu_custom_call.1} parent=31 // pred_check_branch
          %179 = sbr.rel (%p177) target = $region36
        $region35: #{tpu_custom_call.1} parent=31 // pred_region
          %180 = dma.done %s173, 256
        $region36: #{tpu_custom_call.1} parent=31 // pred_fallthru
          _
        %s181 = sand.u32 %s40, 1
        %s182 = scalar_lea.sflag [#allocation6], %s181
        %s183 = sand.u32 %s40, 1
        %s184 = smul.addr %s183, 16
        %s185 = scalar_lea.vmem [#allocation5], %s184
        %p186 = pneg %p53
        %p187 = pneg %p50
        %p188 = pneg %p74
        %p189 = pneg %p71
        %p190 = pneg %p95
        %p191 = pneg %p92
        %p192 = pneg %p121
        %p193 = pneg %p118
        %s194 = sand.u32 %s108, 1
        %s195 = scalar_lea.sflag [#allocation7], %s194
        %s196 = sand.u32 %s108, 1
        %s197 = smul.addr %s196, 16
        %s198 = scalar_lea.vmem [#allocation8], %s197
        %p199 = scmp.eq.s32.totalorder %s25, 0
        // Predicated region
        $region37: #{tpu_custom_call.1} parent=31 // pred_check
          %p200 = pneg %p199
        $region38: #{tpu_custom_call.1} parent=31 // pred_check_branch
          %202 = sbr.rel (%p200) target = $region40
        $region39: #{tpu_custom_call.1} parent=31 // pred_region
          %v203 = vld [vmem:[%s176] sm:$0xff]
          %v204 = vld [vmem:[%s176 + $0x8] sm:$0xff]
          %v205 = vld [vmem:[%s1] sm:$0xff]
          %v206 = vld [vmem:[%s2] sm:$0xff]
          %208 = vset.pattern.permute.xlu0 0
          %209 = vperm.xlu0 %208, %v206
          %v210 = vpop.permute.xlu0 %209
          %vm212 = vcmask 64512
          %v214 = vsel %vm212, %v205, 0
          %216 = vmatprep.subr.mxu0 %v204
          %217 = vmatpush1.msra.mxu0 %v203
          %218 = vmatprep.subr.mxu0 0.0
          %219 = vmatpush1.msra.mxu0 0.0
          %220 = vmatprep.subr.mxu0 0.0
          %221 = vmatpush1.msra.mxu0 0.0
          %222 = vmatprep.subr.mxu0 0.0
          %223 = vmatpush1.msra.mxu0 0.0
          %224 = vmatprep.subr.mxu0 0.0
          %225 = vmatpush1.msra.mxu0 0.0
          %226 = vmatprep.subr.mxu0 0.0
          %227 = vmatpush1.msra.mxu0 0.0
          %228 = vmatprep.subr.mxu0 0.0
          %229 = vmatpush1.msra.mxu0 0.0
          %230 = vmatprep.subr.mxu0 0.0
          %231 = vmatpush1.msra.mxu0 0.0
          %232 = vmatprep.subr.mxu0 0.0
          %233 = vmatpush1.msra.mxu0 0.0
          %234 = vmatprep.subr.mxu0 0.0
          %235 = vmatpush1.msra.mxu0 0.0
          %236 = vmatprep.subr.mxu0 0.0
          %237 = vmatpush1.msra.mxu0 0.0
          %238 = vmatprep.subr.mxu0 0.0
          %239 = vmatpush1.msra.mxu0 0.0
          %240 = vmatprep.subr.mxu0 0.0
          %241 = vmatpush1.msra.mxu0 0.0
          %242 = vmatprep.subr.mxu0 0.0
          %243 = vmatpush1.msra.mxu0 0.0
          %244 = vmatprep.subr.mxu0 0.0
          %245 = vmatpush1.msra.mxu0 0.0
          %246 = vmatprep.subr.mxu0 0.0
          %247 = vmatpush1.msra.mxu0 0.0
          %248 = vmatprep.subr.mxu0 0.0
          %249 = vmatpush1.msra.mxu0 0.0
          %250 = vmatprep.subr.mxu0 0.0
          %251 = vmatpush1.msra.mxu0 0.0
          %252 = vmatprep.subr.mxu0 0.0
          %253 = vmatpush1.msra.mxu0 0.0
          %254 = vmatprep.subr.mxu0 0.0
          %255 = vmatpush1.msra.mxu0 0.0
          %256 = vmatprep.subr.mxu0 0.0
          %257 = vmatpush1.msra.mxu0 0.0
          %258 = vmatprep.subr.mxu0 0.0
          %259 = vmatpush1.msra.mxu0 0.0
          %260 = vmatprep.subr.mxu0 0.0
          %261 = vmatpush1.msra.mxu0 0.0
          %262 = vmatprep.subr.mxu0 0.0
          %263 = vmatpush1.msra.mxu0 0.0
          %264 = vmatprep.subr.mxu0 0.0
          %265 = vmatpush1.msra.mxu0 0.0
          %266 = vmatprep.subr.mxu0 0.0
          %267 = vmatpush1.msra.mxu0 0.0
          %268 = vmatprep.subr.mxu0 0.0
          %269 = vmatpush1.msra.mxu0 0.0
          %270 = vmatprep.subr.mxu0 0.0
          %271 = vmatpush1.msra.mxu0 0.0
          %272 = vmatprep.subr.mxu0 0.0
          %273 = vmatpush1.msra.mxu0 0.0
          %274 = vmatprep.subr.mxu0 0.0
          %275 = vmatpush1.msra.mxu0 0.0
          %276 = vmatprep.subr.mxu0 0.0
          %277 = vmatpush1.msra.mxu0 0.0
          %278 = vmatprep.subr.mxu0 0.0
          %279 = vmatpush1.msra.mxu0 0.0
          %280 = vmatprep.mubr.f32.mxu0 0.0
          %281 = vmatmul.mubr.f32.gmra.mrb[0].mxu0 %v214
          %v282 = vpop.f32.mrb[0].mxu0
          %v283 = vadd.f32 %v210, %v282
          %v284 = vpop.f32.mrb[0].mxu0
          %v285 = vadd.f32 %v210, %v284
          %286 = vdwg.mxu0
          %287 = vst [vmem:[#allocation3] sm:$0xff] %v283
          %288 = vst [vmem:[#allocation3 + $0x8] sm:$0xff] %v285
          %v289 = vlaneseq
          %v290 = vand.u32 %v289, 127
          %v291 = vadd.s32 %v290, 128
          %vm292 = vcmp.lt.s32.totalorder %v290, 192
          %vm293 = vcmp.lt.s32.totalorder %v291, 192
          %v294 = vsel %vm292, 0.0, -1e+30
          %v295 = vsel %vm293, 0.0, -1e+30
          %v298 = vcombine.low %v294, %v295
          %v300 = vunpack.c.l.s4 1966171168
          %v301 = vunpack.c.0.s8 %v300
          %v302 = vlaneseq
          %v303 = vshrl.u32 %v302, 7
          %v304 = vsub.s32 %v301, %v303
          %v305 = vrot.slane %v298, %v304
          %v307 = vunpack.c.l.s4 1966171168
          %v308 = vunpack.c.0.s8 %v307
          %v309 = vlaneseq
          %v310 = vshrl.u32 %v309, 7
          %v311 = vsub.s32 %v308, %v310
          %v312 = vrot.slane %v305, %v311
          %v314 = vlaneseq
          %vm315 = vcmp.ge.s32.totalorder %v314, 0
          %vm316 = vcmp.lt.s32.totalorder %v314, 256
          %vm317 = vmand %vm315, %vm316
          %318 = vst.msk [vmem:[#allocation4] sm:$0x3] %vm317, %v312
        $region40: #{tpu_custom_call.1} parent=31 // pred_fallthru
          _
        %s319 = smul.u32 %s25, 128
        %s320 = sshra.s32 %s319, 7
        %s321 = sand.u32 %s319, 127
        %s322 = smul.addr %s320, 8
        %s323 = scalar_lea.vmem [#allocation3], %s322
        %v324 = vld [vmem:[%s323] sm:$0xff]
        %v325 = vld [vmem:[#allocation3] sm:$0xff]
        %v326 = vld [vmem:[#allocation3 + $0x8] sm:$0xff]
        %v327 = vld [vmem:[#allocation4] sm:$0x3]
        %v329 = vlaneseq
        %v330 = vshrl.u32 %v329, 7
        %v331 = vsub.s32 0, %v330
        %v332 = vrot.slane %v327, %v331
        %v333 = vlaneseq
        %v334 = vshrl.u32 %v333, 7
        %v335 = vsub.s32 1, %v334
        %v336 = vrot.slane %v327, %v335
        %339 = vxpose.xlu0.b32.start [1/16] %v324, 128
        %340 = vxpose.xlu0.b32.cont [2/16] 0.0, 128
        %341 = vxpose.xlu0.b32.cont [3/16] 0.0, 128
        %342 = vxpose.xlu0.b32.cont [4/16] 0.0, 128
        %343 = vxpose.xlu0.b32.cont [5/16] 0.0, 128
        %344 = vxpose.xlu0.b32.cont [6/16] 0.0, 128
        %345 = vxpose.xlu0.b32.cont [7/16] 0.0, 128
        %346 = vxpose.xlu0.b32.cont [8/16] 0.0, 128
        %347 = vxpose.xlu0.b32.cont [9/16] 0.0, 128
        %348 = vxpose.xlu0.b32.cont [10/16] 0.0, 128
        %349 = vxpose.xlu0.b32.cont [11/16] 0.0, 128
        %350 = vxpose.xlu0.b32.cont [12/16] 0.0, 128
        %351 = vxpose.xlu0.b32.cont [13/16] 0.0, 128
        %352 = vxpose.xlu0.b32.cont [14/16] 0.0, 128
        %353 = vxpose.xlu0.b32.cont [15/16] 0.0, 128
        %354 = vxpose.xlu0.b32.end [16/16] 0.0, 128
        %v355 = vpop.trf.xlu0
        %v356 = vpop.trf.xlu0
        %v357 = vpop.trf.xlu0
        %v358 = vpop.trf.xlu0
        %v359 = vpop.trf.xlu0
        %v360 = vpop.trf.xlu0
        %v361 = vpop.trf.xlu0
        %v362 = vpop.trf.xlu0
        %v363 = vpop.trf.xlu0
        %v364 = vpop.trf.xlu0
        %v365 = vpop.trf.xlu0
        %v366 = vpop.trf.xlu0
        %v367 = vpop.trf.xlu0
        %v368 = vpop.trf.xlu0
        %v369 = vpop.trf.xlu0
        %v370 = vpop.trf.xlu0
        %vm371 = vcmask 64512
        %v373 = vsel %vm371, %v355, 0
        %v376 = vsel %vm371, %v356, 0
        %v379 = vsel %vm371, %v357, 0
        %v382 = vsel %vm371, %v358, 0
        %v385 = vsel %vm371, %v359, 0
        %v388 = vsel %vm371, %v360, 0
        %v391 = vsel %vm371, %v361, 0
        %v394 = vsel %vm371, %v362, 0
        %v397 = vsel %vm371, %v363, 0
        %v400 = vsel %vm371, %v364, 0
        %v403 = vsel %vm371, %v365, 0
        %v406 = vsel %vm371, %v366, 0
        %v409 = vsel %vm371, %v367, 0
        %v412 = vsel %vm371, %v368, 0
        %v415 = vsel %vm371, %v369, 0
        %v418 = vsel %vm371, %v370, 0
        %420 = vmatprep.subr.mxu0 %v326
        %421 = vmatpush1.msra.mxu0 %v325
        %422 = vmatprep.subr.mxu0 0.0
        %423 = vmatpush1.msra.mxu0 0.0
        %424 = vmatprep.subr.mxu0 0.0
        %425 = vmatpush1.msra.mxu0 0.0
        %426 = vmatprep.subr.mxu0 0.0
        %427 = vmatpush1.msra.mxu0 0.0
        %428 = vmatprep.subr.mxu0 0.0
        %429 = vmatpush1.msra.mxu0 0.0
        %430 = vmatprep.subr.mxu0 0.0
        %431 = vmatpush1.msra.mxu0 0.0
        %432 = vmatprep.subr.mxu0 0.0
        %433 = vmatpush1.msra.mxu0 0.0
        %434 = vmatprep.subr.mxu0 0.0
        %435 = vmatpush1.msra.mxu0 0.0
        %436 = vmatprep.subr.mxu0 0.0
        %437 = vmatpush1.msra.mxu0 0.0
        %438 = vmatprep.subr.mxu0 0.0
        %439 = vmatpush1.msra.mxu0 0.0
        %440 = vmatprep.subr.mxu0 0.0
        %441 = vmatpush1.msra.mxu0 0.0
        %442 = vmatprep.subr.mxu0 0.0
        %443 = vmatpush1.msra.mxu0 0.0
        %444 = vmatprep.subr.mxu0 0.0
        %445 = vmatpush1.msra.mxu0 0.0
        %446 = vmatprep.subr.mxu0 0.0
        %447 = vmatpush1.msra.mxu0 0.0
        %448 = vmatprep.subr.mxu0 0.0
        %449 = vmatpush1.msra.mxu0 0.0
        %450 = vmatprep.subr.mxu0 0.0
        %451 = vmatpush1.msra.mxu0 0.0
        %452 = vmatprep.subr.mxu0 0.0
        %453 = vmatpush1.msra.mxu0 0.0
        %454 = vmatprep.subr.mxu0 0.0
        %455 = vmatpush1.msra.mxu0 0.0
        %456 = vmatprep.subr.mxu0 0.0
        %457 = vmatpush1.msra.mxu0 0.0
        %458 = vmatprep.subr.mxu0 0.0
        %459 = vmatpush1.msra.mxu0 0.0
        %460 = vmatprep.subr.mxu0 0.0
        %461 = vmatpush1.msra.mxu0 0.0
        %462 = vmatprep.subr.mxu0 0.0
        %463 = vmatpush1.msra.mxu0 0.0
        %464 = vmatprep.subr.mxu0 0.0
        %465 = vmatpush1.msra.mxu0 0.0
        %466 = vmatprep.subr.mxu0 0.0
        %467 = vmatpush1.msra.mxu0 0.0
        %468 = vmatprep.subr.mxu0 0.0
        %469 = vmatpush1.msra.mxu0 0.0
        %470 = vmatprep.subr.mxu0 0.0
        %471 = vmatpush1.msra.mxu0 0.0
        %472 = vmatprep.subr.mxu0 0.0
        %473 = vmatpush1.msra.mxu0 0.0
        %474 = vmatprep.subr.mxu0 0.0
        %475 = vmatpush1.msra.mxu0 0.0
        %476 = vmatprep.subr.mxu0 0.0
        %477 = vmatpush1.msra.mxu0 0.0
        %478 = vmatprep.subr.mxu0 0.0
        %479 = vmatpush1.msra.mxu0 0.0
        %480 = vmatprep.subr.mxu0 0.0
        %481 = vmatpush1.msra.mxu0 0.0
        %482 = vmatprep.subr.mxu0 0.0
        %483 = vmatpush1.msra.mxu0 0.0
        %484 = vmatprep.mubr.f32.mxu0 0.0
        %485 = vmatmul.mubr.f32.gmra.mrb[0].mxu0 %v373
        %v486 = vpop.f32.mrb[0].mxu0
        %v487 = vadd.f32 %v332, %v486
        %v488 = vpop.f32.mrb[0].mxu0
        %v489 = vadd.f32 %v336, %v488
        %490 = vmatprep.mubr.f32.mxu0 0.0
        %491 = vmatmul.mubr.f32.gmra.mrb[0].mxu0 %v376
        %v492 = vpop.f32.mrb[0].mxu0
        %v493 = vadd.f32 %v332, %v492
        %v494 = vpop.f32.mrb[0].mxu0
        %v495 = vadd.f32 %v336, %v494
        %496 = vmatprep.mubr.f32.mxu0 0.0
        %497 = vmatmul.mubr.f32.gmra.mrb[0].mxu0 %v379
        %v498 = vpop.f32.mrb[0].mxu0
        %v499 = vadd.f32 %v332, %v498
        %v500 = vpop.f32.mrb[0].mxu0
        %v501 = vadd.f32 %v336, %v500
        %502 = vmatprep.mubr.f32.mxu0 0.0
        %503 = vmatmul.mubr.f32.gmra.mrb[0].mxu0 %v382
        %v504 = vpop.f32.mrb[0].mxu0
        %v505 = vadd.f32 %v332, %v504
        %v506 = vpop.f32.mrb[0].mxu0
        %v507 = vadd.f32 %v336, %v506
        %508 = vmatprep.mubr.f32.mxu0 0.0
        %509 = vmatmul.mubr.f32.gmra.mrb[0].mxu0 %v385
        %v510 = vpop.f32.mrb[0].mxu0
        %v511 = vadd.f32 %v332, %v510
        %v512 = vpop.f32.mrb[0].mxu0
        %v513 = vadd.f32 %v336, %v512
        %514 = vmatprep.mubr.f32.mxu0 0.0
        %515 = vmatmul.mubr.f32.gmra.mrb[0].mxu0 %v388
        %v516 = vpop.f32.mrb[0].mxu0
        %v517 = vadd.f32 %v332, %v516
        %v518 = vpop.f32.mrb[0].mxu0
        %v519 = vadd.f32 %v336, %v518
        %520 = vmatprep.mubr.f32.mxu0 0.0
        %521 = vmatmul.mubr.f32.gmra.mrb[0].mxu0 %v391
        %v522 = vpop.f32.mrb[0].mxu0
        %v523 = vadd.f32 %v332, %v522
        %v524 = vpop.f32.mrb[0].mxu0
        %v525 = vadd.f32 %v336, %v524
        %526 = vmatprep.mubr.f32.mxu0 0.0
        %527 = vmatmul.mubr.f32.gmra.mrb[0].mxu0 %v394
        %v528 = vpop.f32.mrb[0].mxu0
        %v529 = vadd.f32 %v332, %v528
        %v530 = vpop.f32.mrb[0].mxu0
        %v531 = vadd.f32 %v336, %v530
        %532 = vmatprep.mubr.f32.mxu0 0.0
        %533 = vmatmul.mubr.f32.gmra.mrb[0].mxu0 %v397
        %v534 = vpop.f32.mrb[0].mxu0
        %v535 = vadd.f32 %v332, %v534
        %v536 = vpop.f32.mrb[0].mxu0
        %v537 = vadd.f32 %v336, %v536
        %538 = vmatprep.mubr.f32.mxu0 0.0
        %539 = vmatmul.mubr.f32.gmra.mrb[0].mxu0 %v400
        %v540 = vpop.f32.mrb[0].mxu0
        %v541 = vadd.f32 %v332, %v540
        %v542 = vpop.f32.mrb[0].mxu0
        %v543 = vadd.f32 %v336, %v542
        %544 = vmatprep.mubr.f32.mxu0 0.0
        %545 = vmatmul.mubr.f32.gmra.mrb[0].mxu0 %v403
        %v546 = vpop.f32.mrb[0].mxu0
        %v547 = vadd.f32 %v332, %v546
        %v548 = vpop.f32.mrb[0].mxu0
        %v549 = vadd.f32 %v336, %v548
        %550 = vmatprep.mubr.f32.mxu0 0.0
        %551 = vmatmul.mubr.f32.gmra.mrb[0].mxu0 %v406
        %v552 = vpop.f32.mrb[0].mxu0
        %v553 = vadd.f32 %v332, %v552
        %v554 = vpop.f32.mrb[0].mxu0
        %v555 = vadd.f32 %v336, %v554
        %556 = vmatprep.mubr.f32.mxu0 0.0
        %557 = vmatmul.mubr.f32.gmra.mrb[0].mxu0 %v409
        %v558 = vpop.f32.mrb[0].mxu0
        %v559 = vadd.f32 %v332, %v558
        %v560 = vpop.f32.mrb[0].mxu0
        %v561 = vadd.f32 %v336, %v560
        %562 = vmatprep.mubr.f32.mxu0 0.0
        %563 = vmatmul.mubr.f32.gmra.mrb[0].mxu0 %v412
        %v564 = vpop.f32.mrb[0].mxu0
        %v565 = vadd.f32 %v332, %v564
        %v566 = vpop.f32.mrb[0].mxu0
        %v567 = vadd.f32 %v336, %v566
        %568 = vmatprep.mubr.f32.mxu0 0.0
        %569 = vmatmul.mubr.f32.gmra.mrb[0].mxu0 %v415
        %v570 = vpop.f32.mrb[0].mxu0
        %v571 = vadd.f32 %v332, %v570
        %v572 = vpop.f32.mrb[0].mxu0
        %v573 = vadd.f32 %v336, %v572
        %574 = vmatprep.mubr.f32.mxu0 0.0
        %575 = vmatmul.mubr.f32.gmra.mrb[0].mxu0 %v418
        %v576 = vpop.f32.mrb[0].mxu0
        %v577 = vadd.f32 %v332, %v576
        %v578 = vpop.f32.mrb[0].mxu0
        %v579 = vadd.f32 %v336, %v578
        %580 = vdwg.mxu0
        %v581 = vmax.f32 %v487, %v489
        %582 = vmax.xlane.f32.xlu0 %v581
        %v583 = vpop.xlane.xlu0 %582
        %v584 = vmax.f32 %v493, %v495
        %585 = vmax.xlane.f32.xlu0 %v584
        %v586 = vpop.xlane.xlu0 %585
        %v587 = vmax.f32 %v499, %v501
        %588 = vmax.xlane.f32.xlu0 %v587
        %v589 = vpop.xlane.xlu0 %588
        %v590 = vmax.f32 %v505, %v507
        %591 = vmax.xlane.f32.xlu0 %v590
        %v592 = vpop.xlane.xlu0 %591
        %v593 = vmax.f32 %v511, %v513
        %594 = vmax.xlane.f32.xlu0 %v593
        %v595 = vpop.xlane.xlu0 %594
        %v596 = vmax.f32 %v517, %v519
        %597 = vmax.xlane.f32.xlu0 %v596
        %v598 = vpop.xlane.xlu0 %597
        %v599 = vmax.f32 %v523, %v525
        %600 = vmax.xlane.f32.xlu0 %v599
        %v601 = vpop.xlane.xlu0 %600
        %v602 = vmax.f32 %v529, %v531
        %603 = vmax.xlane.f32.xlu0 %v602
        %v604 = vpop.xlane.xlu0 %603
        %v605 = vmax.f32 %v535, %v537
        %606 = vmax.xlane.f32.xlu0 %v605
        %v607 = vpop.xlane.xlu0 %606
        %v608 = vmax.f32 %v541, %v543
        %609 = vmax.xlane.f32.xlu0 %v608
        %v610 = vpop.xlane.xlu0 %609
        %v611 = vmax.f32 %v547, %v549
        %612 = vmax.xlane.f32.xlu0 %v611
        %v613 = vpop.xlane.xlu0 %612
        %v614 = vmax.f32 %v553, %v555
        %615 = vmax.xlane.f32.xlu0 %v614
        %v616 = vpop.xlane.xlu0 %615
        %v617 = vmax.f32 %v559, %v561
        %618 = vmax.xlane.f32.xlu0 %v617
        %v619 = vpop.xlane.xlu0 %618
        %v620 = vmax.f32 %v565, %v567
        %621 = vmax.xlane.f32.xlu0 %v620
        %v622 = vpop.xlane.xlu0 %621
        %v623 = vmax.f32 %v571, %v573
        %624 = vmax.xlane.f32.xlu0 %v623
        %v625 = vpop.xlane.xlu0 %624
        %v626 = vmax.f32 %v577, %v579
        %627 = vmax.xlane.f32.xlu0 %v626
        %v628 = vpop.xlane.xlu0 %627
        %v629 = vsub.f32 %v487, %v583
        %v630 = vsub.f32 %v489, %v583
        %v631 = vsub.f32 %v493, %v586
        %v632 = vsub.f32 %v495, %v586
        %v633 = vsub.f32 %v499, %v589
        %v634 = vsub.f32 %v501, %v589
        %v635 = vsub.f32 %v505, %v592
        %v636 = vsub.f32 %v507, %v592
        %v637 = vsub.f32 %v511, %v595
        %v638 = vsub.f32 %v513, %v595
        %v639 = vsub.f32 %v517, %v598
        %v640 = vsub.f32 %v519, %v598
        %v641 = vsub.f32 %v523, %v601
        %v642 = vsub.f32 %v525, %v601
        %v643 = vsub.f32 %v529, %v604
        %v644 = vsub.f32 %v531, %v604
        %v645 = vsub.f32 %v535, %v607
        %v646 = vsub.f32 %v537, %v607
        %v647 = vsub.f32 %v541, %v610
        %v648 = vsub.f32 %v543, %v610
        %v649 = vsub.f32 %v547, %v613
        %v650 = vsub.f32 %v549, %v613
        %v651 = vsub.f32 %v553, %v616
        %v652 = vsub.f32 %v555, %v616
        %v653 = vsub.f32 %v559, %v619
        %v654 = vsub.f32 %v561, %v619
        %v655 = vsub.f32 %v565, %v622
        %v656 = vsub.f32 %v567, %v622
        %v657 = vsub.f32 %v571, %v625
        %v658 = vsub.f32 %v573, %v625
        %v659 = vsub.f32 %v577, %v628
        %v660 = vsub.f32 %v579, %v628
        %v661 = vmul.f32 %v629, 1.442695
        %v662 = vpow.pop %v661
        %v663 = vmul.f32 %v630, 1.442695
        %v664 = vpow.pop %v663
        %v665 = vmul.f32 %v631, 1.442695
        %v666 = vpow.pop %v665
        %v667 = vmul.f32 %v632, 1.442695
        %v668 = vpow.pop %v667
        %v669 = vmul.f32 %v633, 1.442695
        %v670 = vpow.pop %v669
        %v671 = vmul.f32 %v634, 1.442695
        %v672 = vpow.pop %v671
        %v673 = vmul.f32 %v635, 1.442695
        %v674 = vpow.pop %v673
        %v675 = vmul.f32 %v636, 1.442695
        %v676 = vpow.pop %v675
        %v677 = vmul.f32 %v637, 1.442695
        %v678 = vpow.pop %v677
        %v679 = vmul.f32 %v638, 1.442695
        %v680 = vpow.pop %v679
        %v681 = vmul.f32 %v639, 1.442695
        %v682 = vpow.pop %v681
        %v683 = vmul.f32 %v640, 1.442695
        %v684 = vpow.pop %v683
        %v685 = vmul.f32 %v641, 1.442695
        %v686 = vpow.pop %v685
        %v687 = vmul.f32 %v642, 1.442695
        %v688 = vpow.pop %v687
        %v689 = vmul.f32 %v643, 1.442695
        %v690 = vpow.pop %v689
        %v691 = vmul.f32 %v644, 1.442695
        %v692 = vpow.pop %v691
        %v693 = vmul.f32 %v645, 1.442695
        %v694 = vpow.pop %v693
        %v695 = vmul.f32 %v646, 1.442695
        %v696 = vpow.pop %v695
        %v697 = vmul.f32 %v647, 1.442695
        %v698 = vpow.pop %v697
        %v699 = vmul.f32 %v648, 1.442695
        %v700 = vpow.pop %v699
        %v701 = vmul.f32 %v649, 1.442695
        %v702 = vpow.pop %v701
        %v703 = vmul.f32 %v650, 1.442695
        %v704 = vpow.pop %v703
        %v705 = vmul.f32 %v651, 1.442695
        %v706 = vpow.pop %v705
        %v707 = vmul.f32 %v652, 1.442695
        %v708 = vpow.pop %v707
        %v709 = vmul.f32 %v653, 1.442695
        %v710 = vpow.pop %v709
        %v711 = vmul.f32 %v654, 1.442695
        %v712 = vpow.pop %v711
        %v713 = vmul.f32 %v655, 1.442695
        %v714 = vpow.pop %v713
        %v715 = vmul.f32 %v656, 1.442695
        %v716 = vpow.pop %v715
        %v717 = vmul.f32 %v657, 1.442695
        %v718 = vpow.pop %v717
        %v719 = vmul.f32 %v658, 1.442695
        %v720 = vpow.pop %v719
        %v721 = vmul.f32 %v659, 1.442695
        %v722 = vpow.pop %v721
        %v723 = vmul.f32 %v660, 1.442695
        %v724 = vpow.pop %v723
        %v725 = vadd.f32 %v662, %v664
        %726 = vadd.xlane.f32.xlu0 %v725
        %v727 = vpop.xlane.xlu0 %726
        %v728 = vadd.f32 %v666, %v668
        %729 = vadd.xlane.f32.xlu0 %v728
        %v730 = vpop.xlane.xlu0 %729
        %v731 = vadd.f32 %v670, %v672
        %732 = vadd.xlane.f32.xlu0 %v731
        %v733 = vpop.xlane.xlu0 %732
        %v734 = vadd.f32 %v674, %v676
        %735 = vadd.xlane.f32.xlu0 %v734
        %v736 = vpop.xlane.xlu0 %735
        %v737 = vadd.f32 %v678, %v680
        %738 = vadd.xlane.f32.xlu0 %v737
        %v739 = vpop.xlane.xlu0 %738
        %v740 = vadd.f32 %v682, %v684
        %741 = vadd.xlane.f32.xlu0 %v740
        %v742 = vpop.xlane.xlu0 %741
        %v743 = vadd.f32 %v686, %v688
        %744 = vadd.xlane.f32.xlu0 %v743
        %v745 = vpop.xlane.xlu0 %744
        %v746 = vadd.f32 %v690, %v692
        %747 = vadd.xlane.f32.xlu0 %v746
        %v748 = vpop.xlane.xlu0 %747
        %v749 = vadd.f32 %v694, %v696
        %750 = vadd.xlane.f32.xlu0 %v749
        %v751 = vpop.xlane.xlu0 %750
        %v752 = vadd.f32 %v698, %v700
        %753 = vadd.xlane.f32.xlu0 %v752
        %v754 = vpop.xlane.xlu0 %753
        %v755 = vadd.f32 %v702, %v704
        %756 = vadd.xlane.f32.xlu0 %v755
        %v757 = vpop.xlane.xlu0 %756
        %v758 = vadd.f32 %v706, %v708
        %759 = vadd.xlane.f32.xlu0 %v758
        %v760 = vpop.xlane.xlu0 %759
        %v761 = vadd.f32 %v710, %v712
        %762 = vadd.xlane.f32.xlu0 %v761
        %v763 = vpop.xlane.xlu0 %762
        %v764 = vadd.f32 %v714, %v716
        %765 = vadd.xlane.f32.xlu0 %v764
        %v766 = vpop.xlane.xlu0 %765
        %v767 = vadd.f32 %v718, %v720
        %768 = vadd.xlane.f32.xlu0 %v767
        %v769 = vpop.xlane.xlu0 %768
        %v770 = vadd.f32 %v722, %v724
        %771 = vadd.xlane.f32.xlu0 %v770
        %v772 = vpop.xlane.xlu0 %771
        %v773 = vrcp.pop %v727
        %v774 = vrcp.pop %v730
        %v775 = vrcp.pop %v733
        %v776 = vrcp.pop %v736
        %v777 = vrcp.pop %v739
        %v778 = vrcp.pop %v742
        %v779 = vrcp.pop %v745
        %v780 = vrcp.pop %v748
        %v781 = vrcp.pop %v751
        %v782 = vrcp.pop %v754
        %v783 = vrcp.pop %v757
        %v784 = vrcp.pop %v760
        %v785 = vrcp.pop %v763
        %v786 = vrcp.pop %v766
        %v787 = vrcp.pop %v769
        %v788 = vrcp.pop %v772
        %v789 = vmul.f32 %v662, %v773
        %v790 = vmul.f32 %v664, %v773
        %v791 = vmul.f32 %v666, %v774
        %v792 = vmul.f32 %v668, %v774
        %v793 = vmul.f32 %v670, %v775
        %v794 = vmul.f32 %v672, %v775
        %v795 = vmul.f32 %v674, %v776
        %v796 = vmul.f32 %v676, %v776
        %v797 = vmul.f32 %v678, %v777
        %v798 = vmul.f32 %v680, %v777
        %v799 = vmul.f32 %v682, %v778
        %v800 = vmul.f32 %v684, %v778
        %v801 = vmul.f32 %v686, %v779
        %v802 = vmul.f32 %v688, %v779
        %v803 = vmul.f32 %v690, %v780
        %v804 = vmul.f32 %v692, %v780
        %v805 = vmul.f32 %v694, %v781
        %v806 = vmul.f32 %v696, %v781
        %v807 = vmul.f32 %v698, %v782
        %v808 = vmul.f32 %v700, %v782
        %v809 = vmul.f32 %v702, %v783
        %v810 = vmul.f32 %v704, %v783
        %v811 = vmul.f32 %v706, %v784
        %v812 = vmul.f32 %v708, %v784
        %v813 = vmul.f32 %v710, %v785
        %v814 = vmul.f32 %v712, %v785
        %v815 = vmul.f32 %v714, %v786
        %v816 = vmul.f32 %v716, %v786
        %v817 = vmul.f32 %v718, %v787
        %v818 = vmul.f32 %v720, %v787
        %v819 = vmul.f32 %v722, %v788
        %v820 = vmul.f32 %v724, %v788
        %s821 = smul.addr %s320, 8
        %s822 = scalar_lea.vmem %s176, %s821 [#allocation5]
        %v823 = vld [vmem:[%s822] sm:$0xff]
        %824 = vmatprep.subr.mxu0 %v790
        %825 = vmatpush1.msra.mxu0 %v789
        %826 = vmatprep.subr.mxu0 %v792
        %827 = vmatpush1.msra.mxu0 %v791
        %828 = vmatprep.subr.mxu0 %v794
        %829 = vmatpush1.msra.mxu0 %v793
        %830 = vmatprep.subr.mxu0 %v796
        %831 = vmatpush1.msra.mxu0 %v795
        %832 = vmatprep.subr.mxu0 %v798
        %833 = vmatpush1.msra.mxu0 %v797
        %834 = vmatprep.subr.mxu0 %v800
        %835 = vmatpush1.msra.mxu0 %v799
        %836 = vmatprep.subr.mxu0 %v802
        %837 = vmatpush1.msra.mxu0 %v801
        %838 = vmatprep.subr.mxu0 %v804
        %839 = vmatpush1.msra.mxu0 %v803
        %840 = vmatprep.subr.mxu0 %v806
        %841 = vmatpush1.msra.mxu0 %v805
        %842 = vmatprep.subr.mxu0 %v808
        %843 = vmatpush1.msra.mxu0 %v807
        %844 = vmatprep.subr.mxu0 %v810
        %845 = vmatpush1.msra.mxu0 %v809
        %846 = vmatprep.subr.mxu0 %v812
        %847 = vmatpush1.msra.mxu0 %v811
        %848 = vmatprep.subr.mxu0 %v814
        %849 = vmatpush1.msra.mxu0 %v813
        %850 = vmatprep.subr.mxu0 %v816
        %851 = vmatpush1.msra.mxu0 %v815
        %852 = vmatprep.subr.mxu0 %v818
        %853 = vmatpush1.msra.mxu0 %v817
        %854 = vmatprep.subr.mxu0 %v820
        %855 = vmatpush1.msra.mxu0 %v819
        %856 = vmatprep.subr.mxu0 0.0
        %857 = vmatpush1.msra.mxu0 0.0
        %858 = vmatprep.subr.mxu0 0.0
        %859 = vmatpush1.msra.mxu0 0.0
        %860 = vmatprep.subr.mxu0 0.0
        %861 = vmatpush1.msra.mxu0 0.0
        %862 = vmatprep.subr.mxu0 0.0
        %863 = vmatpush1.msra.mxu0 0.0
        %864 = vmatprep.subr.mxu0 0.0
        %865 = vmatpush1.msra.mxu0 0.0
        %866 = vmatprep.subr.mxu0 0.0
        %867 = vmatpush1.msra.mxu0 0.0
        %868 = vmatprep.subr.mxu0 0.0
        %869 = vmatpush1.msra.mxu0 0.0
        %870 = vmatprep.subr.mxu0 0.0
        %871 = vmatpush1.msra.mxu0 0.0
        %872 = vmatprep.subr.mxu0 0.0
        %873 = vmatpush1.msra.mxu0 0.0
        %874 = vmatprep.subr.mxu0 0.0
        %875 = vmatpush1.msra.mxu0 0.0
        %876 = vmatprep.subr.mxu0 0.0
        %877 = vmatpush1.msra.mxu0 0.0
        %878 = vmatprep.subr.mxu0 0.0
        %879 = vmatpush1.msra.mxu0 0.0
        %880 = vmatprep.subr.mxu0 0.0
        %881 = vmatpush1.msra.mxu0 0.0
        %882 = vmatprep.subr.mxu0 0.0
        %883 = vmatpush1.msra.mxu0 0.0
        %884 = vmatprep.subr.mxu0 0.0
        %885 = vmatpush1.msra.mxu0 0.0
        %886 = vmatprep.subr.mxu0 0.0
        %887 = vmatpush1.msra.mxu0 0.0
        %888 = vmatprep.mubr.f32.mxu0 0.0
        %889 = vmatmul.mubr.f32.gmra.mrb[0].mxu0 %v823
        %v890 = vpop.f32.mrb[0].mxu0
        %v891 = vadd.f32 0.0, %v890
        %v892 = vpop.f32.mrb[0].mxu0
        %v893 = vadd.f32 0.0, %v892
        %894 = vdwg.mxu0
        // Predicated region
        $region41: #{tpu_custom_call.1} parent=31 // pred_check
          %p895 = pneg %p199
        $region42: #{tpu_custom_call.1} parent=31 // pred_check_branch
          %897 = sbr.rel (%p895) target = $region44
        $region43: #{tpu_custom_call.1} parent=31 // pred_region
          %898 = vst [vmem:[#allocation2] sm:$0xff] %v891
          %899 = vst [vmem:[#allocation2 + $0x8] sm:$0xff] %v893
        $region44: #{tpu_custom_call.1} parent=31 // pred_fallthru
          _
        %p900 = scmp.gt.s32.totalorder %s25, 0
        // Predicated region
        $region45: #{tpu_custom_call.1} parent=31 // pred_check
          %p901 = pneg %p900
        $region46: #{tpu_custom_call.1} parent=31 // pred_check_branch
          %903 = sbr.rel (%p901) target = $region48
        $region47: #{tpu_custom_call.1} parent=31 // pred_region
          %v904 = vld [vmem:[#allocation2] sm:$0xff]
          %v905 = vld [vmem:[#allocation2 + $0x8] sm:$0xff]
          %v906 = vadd.f32 %v904, %v891
          %v907 = vadd.f32 %v905, %v893
          %908 = vst [vmem:[#allocation2] sm:$0xff] %v906
          %909 = vst [vmem:[#allocation2 + $0x8] sm:$0xff] %v907
        $region48: #{tpu_custom_call.1} parent=31 // pred_fallthru
          _
        %p910 = scmp.eq.s32.totalorder %s25, 1
        // Predicated region
        $region49: #{tpu_custom_call.1} parent=31 // pred_check
          %p911 = pneg %p910
        $region50: #{tpu_custom_call.1} parent=31 // pred_check_branch
          %913 = sbr.rel (%p911) target = $region52
        $region51: #{tpu_custom_call.1} parent=31 // pred_region
          %v914 = vld [vmem:[#allocation2] sm:$0xff]
          %v915 = vld [vmem:[#allocation2 + $0x8] sm:$0xff]
          %v916 = vld [vmem:[%s176] sm:$0xff]
          %v917 = vld [vmem:[%s176 + $0x8] sm:$0xff]
          %v918 = vadd.f32 %v914, %v916
          %v919 = vadd.f32 %v915, %v917
          %920 = vst [vmem:[%s198] sm:$0xff] %v918
          %921 = vst [vmem:[%s198 + $0x8] sm:$0xff] %v919
        $region52: #{tpu_custom_call.1} parent=31 // pred_fallthru
          _
        %s922 = sand.u32 %s108, 1
        %s923 = scalar_lea.sflag [#allocation7], %s922
        %s924 = sand.u32 %s108, 1
        %s925 = smul.addr %s924, 16
        %s926 = scalar_lea.vmem [#allocation8], %s925
        // Predicated region
        $region53: #{tpu_custom_call.1} parent=31 // pred_check
          %p927 = pneg %p118
        $region54: #{tpu_custom_call.1} parent=31 // pred_check_branch
          %929 = sbr.rel (%p927) target = $region56
        $region55: #{tpu_custom_call.1} parent=31 // pred_region
          %s931 = ssub.s32 256, 256
          %932 = vsyncadd %s923, %s931
          %s933 = smul.addr %s24, 2
          %s934 = smul.addr %s933, 128
          %s935 = scalar_lea.hbm %s3, %s934
          %s937 = sshll.u32 %s926, 4
          %s938 = int_to_ptr.vmem [resolvable:$true] %s937
          %940 = dma.vmem_to_hbm [thread:$0]  %s938, 256, %s935, %s923
        $region56: #{tpu_custom_call.1} parent=31 // pred_fallthru
          _
      $region32: #{tpu_custom_call.1} parent=5 // pred_fallthru
        _
      %p941 = scmp.le.s32.totalorder 2, %s15
      // Predicated region
      $region57: #{tpu_custom_call.1} parent=5 // pred_check
        %p942 = pneg %p941
      $region58: #{tpu_custom_call.1} parent=5 // pred_check_branch
        %944 = sbr.rel (%p942) target = $region60
      $region59: #{tpu_custom_call.1} parent=5 // pred_region
        %s945 = ssub.s32 %s15, 2
        // Predicated region
        $region61: #{tpu_custom_call.1} parent=59 // pred_check
          %p946 = pneg %p124
        $region62: #{tpu_custom_call.1} parent=59 // pred_check_branch
          %948 = sbr.rel (%p946) target = $region64
        $region63: #{tpu_custom_call.1} parent=59 // pred_region
          %s949 = sand.u32 %s109, 1
          %s950 = scalar_lea.sflag [#allocation7], %s949
          %s951 = sand.u32 %s109, 1
          %s952 = smul.addr %s951, 16
          %s953 = scalar_lea.vmem [#allocation8], %s952
          %954 = dma.done %s950, 256
        $region64: #{tpu_custom_call.1} parent=59 // pred_fallthru
          _
      $region60: #{tpu_custom_call.1} parent=5 // pred_fallthru
        _
    $region6: #{tpu_custom_call.1} parent=1 // loop_footer
      %s19 = sadd.s32 1, %s15
    $region7: #{tpu_custom_call.1} parent=1 // loop_footer_branch
      %14 = sbr.rel target = $region3
    $region8: #{tpu_custom_call.1} parent=1 // loop_exit
      _
    %955 = vsyncpa [#allocation6], 1
    %s956 = scalar_lea.sflag [#allocation6], 1
    %957 = vsyncpa %s956, 1
    %958 = vsyncpa [#allocation7], 1
    %s959 = scalar_lea.sflag [#allocation7], 1
    %960 = vsyncpa %s959, 1

</llo_original>
